<compile_context>
chip_gen: v6e
topology: v6e:2x2x1
jax: 0.10.0
libtpu: 0.0.40
codegen_flags: <defaults>
</compile_context>

<pallas_src>
import functools

import jax
import jax.numpy as jnp
from jax.experimental import pallas as pl
from jax.experimental.pallas import tpu as pltpu


def _round_up(n, m):
    return ((n + m - 1) // m) * m


def linear_kernel(x_ref, wf_ref, bf_ref, o_ref):
    # x_ref:  [TB, D_in]    f32  (batch tile, streams per grid step)
    # wf_ref: [D_in, D_out] f32  (folded weight, VMEM-resident across steps)
    # bf_ref: [1, D_out]    f32  (folded bias)
    # o_ref:  [TB, D_out]   f32
    y = jnp.dot(x_ref[...], wf_ref[...],
                preferred_element_type=jnp.float32)          # MXU, f32 acc
    o_ref[...] = (y + bf_ref[...]).astype(o_ref.dtype)       # VPU bias add


def prepare_folded_params(w1, b1, w2, b2):
    """One-time parameter prep (hoist out of the per-call forward).

    w1: [D_in, H]  (pre-transposed vs PyTorch's [H, D_in]),  b1: [H]
    w2: [H, D_out] (pre-transposed vs PyTorch's [D_out, H]), b2: [D_out]

    Since fc2(fc1(x)) has no nonlinearity, it folds exactly into one affine map:
        y = x @ (w1 @ w2) + (b1 @ w2 + b2)
    Returns (wf [D_in, D_out] f32, bf [1, D_out] f32).
    """
    w1 = w1.astype(jnp.float32)
    w2 = w2.astype(jnp.float32)
    wf = jnp.dot(w1, w2, precision=jax.lax.Precision.HIGHEST)
    bf = (jnp.dot(b1.astype(jnp.float32).reshape(1, -1), w2,
                  precision=jax.lax.Precision.HIGHEST)
          + b2.astype(jnp.float32).reshape(1, -1))
    return wf, bf


@functools.partial(jax.jit, static_argnames=("block_b",))
def neural_net_forward(x, wf, bf, *, block_b=4096):
    """Fused NeuralNet forward: x [B, D_in] f32 -> [B, D_out] f32.

    wf, bf come from prepare_folded_params (called once, outside this function).
    """
    B, D_in = x.shape
    D_out = wf.shape[1]

    # Batch tile: multiple of 8 (sublane), capped at block_b, and no larger
    # than ceil(B/2) so the "parallel" grid axis has >= 2 steps for mid-size
    # batches (keeps both v7x TensorCores busy; no effect on v5e/v6e).
    half = _round_up(pl.cdiv(B, 2), 8)
    TB = max(8, min(block_b, half))
    grid = (pl.cdiv(B, TB),)   # ragged last block handled by Pallas masking

    flops = 2 * B * D_in * D_out
    bytes_accessed = (B * D_in * 4) + (D_in * D_out * 4) + (D_out * 4) \
        + (B * D_out * 4)

    return pl.pallas_call(
        linear_kernel,
        out_shape=jax.ShapeDtypeStruct((B, D_out), jnp.float32),
        grid=grid,
        in_specs=[
            # Activations stream over the batch grid axis.
            pl.BlockSpec((TB, D_in), lambda i: (i, 0)),
            # Folded weight / bias: constant index_map -> loaded once, resident.
            pl.BlockSpec((D_in, D_out), lambda i: (0, 0)),
            pl.BlockSpec((1, D_out), lambda i: (0, 0)),
        ],
        # Narrow (un-padded) output: last block dim == full array dim is legal;
        # only D_out lanes/row ever hit HBM, no post-slice pass needed.
        out_specs=pl.BlockSpec((TB, D_out), lambda i: (i, 0)),
        compiler_params=pltpu.CompilerParams(
            dimension_semantics=("parallel",)),
        cost_estimate=pl.CostEstimate(
            flops=flops, transcendentals=0, bytes_accessed=bytes_accessed),
    )(x, wf, bf)


def init_params(key, input_dim, output_dim, hidden=100):
    """Deterministic init mimicking nn.Linear's U(-1/sqrt(fan_in), 1/sqrt(fan_in))."""
    k1, k2, k3, k4 = jax.random.split(key, 4)
    lim1 = 1.0 / jnp.sqrt(jnp.float32(input_dim))
    lim2 = 1.0 / jnp.sqrt(jnp.float32(hidden))
    # Stored as [in, out] (already transposed relative to PyTorch's [out, in]).
    w1 = jax.random.uniform(k1, (input_dim, hidden), jnp.float32, -lim1, lim1)
    b1 = jax.random.uniform(k2, (hidden,), jnp.float32, -lim1, lim1)
    w2 = jax.random.uniform(k3, (hidden, output_dim), jnp.float32, -lim2, lim2)
    b2 = jax.random.uniform(k4, (output_dim,), jnp.float32, -lim2, lim2)
    return w1, b1, w2, b2


if __name__ == "__main__":
    key = jax.random.PRNGKey(0)
    k_x, k_x2, k_p = jax.random.split(key, 3)

    batch, input_dim, output_dim = 8, 32, 16
    w1, b1, w2, b2 = init_params(k_p, input_dim, output_dim)

    # One-time parameter prep (fold fc1+fc2, f32).
    wf, bf = prepare_folded_params(w1, b1, w2, b2)
    wf, bf = jax.block_until_ready((wf, bf))

    # --- small-shape check (single grid step) ---
    x = jax.random.normal(k_x, (batch, input_dim), jnp.float32)
    out = neural_net_forward(x, wf, bf)
    jax.block_until_ready(out)
    ref = (x @ w1 + b1) @ w2 + b2   # same math as PyTorch fc2(fc1(x)), f32
    assert out.shape == (batch, output_dim)
    assert jnp.allclose(out, ref, atol=2e-2, rtol=2e-2), float(
        jnp.max(jnp.abs(out - ref)))

    # --- multi-tile check (grid > 1, ragged last batch block) ---
    batch2 = 200
    x2 = jax.random.normal(k_x2, (batch2, input_dim), jnp.float32)
    out2 = neural_net_forward(x2, wf, bf, block_b=64)
    jax.block_until_ready(out2)
    ref2 = (x2 @ w1 + b1) @ w2 + b2
    assert out2.shape == (batch2, output_dim)
    assert jnp.allclose(out2, ref2, atol=2e-2, rtol=2e-2), float(
        jnp.max(jnp.abs(out2 - ref2)))

    print("KERNEL_OK")
</pallas_src>

<mosaic_0001>
module attributes {stable_mosaic.version = 11 : i64} {
  func.func @linear_kernel(%arg0: i32, %arg1: memref<8x32xf32, #tpu.memory_space<vmem>>, %arg2: memref<32x16xf32, #tpu.memory_space<vmem>>, %arg3: memref<1x16xf32, #tpu.memory_space<vmem>>, %arg4: memref<8x16xf32, #tpu.memory_space<vmem>>) attributes {dimension_semantics = [#tpu.dimension_semantics<parallel>], iteration_bounds = array<i64: 1>, scalar_prefetch = 0 : i64, scratch_operands = 0 : i64, tpu.core_type = #tpu.core_type<tc>, window_params = [{transform_indices = @transform_0, window_bounds = array<i64: 8, 32>}, {pipeline_mode = #tpu.pipeline_mode<synchronous>, transform_indices = @transform_1, window_bounds = array<i64: 32, 16>}, {pipeline_mode = #tpu.pipeline_mode<synchronous>, transform_indices = @transform_2, window_bounds = array<i64: 1, 16>}, {transform_indices = @transform_3, window_bounds = array<i64: 8, 16>}]} {
    %c0 = arith.constant 0 : index
    %c0_0 = arith.constant 0 : index
    %0 = vector.load %arg1[%c0, %c0_0] : memref<8x32xf32, #tpu.memory_space<vmem>>, vector<8x32xf32>
    %c0_1 = arith.constant 0 : index
    %c0_2 = arith.constant 0 : index
    %1 = vector.load %arg2[%c0_1, %c0_2] : memref<32x16xf32, #tpu.memory_space<vmem>>, vector<32x16xf32>
    %cst = arith.constant dense<0.000000e+00> : vector<8x16xf32>
    %2 = tpu.matmul %0, %1, %cst {dimension_numbers = #tpu.dot_dimension_numbers<[1], [0], [0], [1], [0, 0, 1, 1], [], []>} : vector<8x32xf32>, vector<32x16xf32>, vector<8x16xf32> -> vector<8x16xf32>
    %c0_3 = arith.constant 0 : index
    %c0_4 = arith.constant 0 : index
    %3 = vector.load %arg3[%c0_3, %c0_4] : memref<1x16xf32, #tpu.memory_space<vmem>>, vector<1x16xf32>
    %4 = vector.broadcast %3 : vector<1x16xf32> to vector<8x16xf32>
    %5 = arith.addf %2, %4 : vector<8x16xf32>
    %c0_5 = arith.constant 0 : index
    %c0_6 = arith.constant 0 : index
    %6 = vector.load %arg4[%c0_5, %c0_6] : memref<8x16xf32, #tpu.memory_space<vmem>>, vector<8x16xf32>
    tpu.vector_store %arg4[%c0_5, %c0_6], %5 {strides = array<i32>} : memref<8x16xf32, #tpu.memory_space<vmem>>, vector<8x16xf32>,
    return
  }
  func.func @transform_0(%arg0: i32) -> (i32, i32) {
    %c0_i32 = arith.constant 0 : i32
    %c0_i32_0 = arith.constant 0 : i32
    return %arg0, %c0_i32 : i32, i32
  }
  func.func @transform_1(%arg0: i32) -> (i32, i32) {
    %c0_i32 = arith.constant 0 : i32
    %c0_i32_0 = arith.constant 0 : i32
    %c0_i32_1 = arith.constant 0 : i32
    return %c0_i32, %c0_i32_0 : i32, i32
  }
  func.func @transform_2(%arg0: i32) -> (i32, i32) {
    %c0_i32 = arith.constant 0 : i32
    %c0_i32_0 = arith.constant 0 : i32
    %c0_i32_1 = arith.constant 0 : i32
    return %c0_i32, %c0_i32_0 : i32, i32
  }
  func.func @transform_3(%arg0: i32) -> (i32, i32) {
    %c0_i32 = arith.constant 0 : i32
    %c0_i32_0 = arith.constant 0 : i32
    return %arg0, %c0_i32 : i32, i32
  }
}

</mosaic_0001>

<llo_original>
// kernel: neural_net_forward.1
$region0: #{neural_net_forward.1}
  #allocation0 [shape = 'u32[]', space=smem, size = 0x4, offset = 0x4, fixed_abs, tag = 'smem constant byte address 0x4 - core index']
  #allocation1 [shape = 'u32[144,128]{1,0:T(1,128)}', space=vmem, size = 0x12000, scoped, tag = 'internal scratch']
  %s0 = inlined_call_operand.vmem [shape: f32[8,32], index: 0, kind: input, shape index: {}]
  %s1 = inlined_call_operand.vmem [shape: f32[32,16], index: 1, kind: input, shape index: {}]
  %s2 = inlined_call_operand.vmem [shape: f32[1,16], index: 2, kind: input, shape index: {}]
  %s3 = inlined_call_operand.hbm [shape: f32[8,16], index: 3, kind: output, shape index: {}]
  %s4 = sld [smem:[#allocation0]]
  $region22: #{neural_net_forward.1} parent=0
    _
  %s6 = ssub.s32 1, %s4
  %s7 = scalar_select 0, %s6, %s4
  $region1: #{neural_net_forward.1} parent=0
    #allocation2 [shape = 'u8[4096]{0}', space=vmem, size = 0x1000, scoped, tag = 'output window, operand 0, single buffered']
    #allocation3 [shape = 's32[1]{0}', space=sflag, size = 0x4, scoped, tag = 'scoped memory for neural_net_forward.1']
    %8 = vsyncpa [#allocation3], 0
    // Predicated region
    $region2: #{neural_net_forward.1} parent=1 // pred_check
      _
    $region3: #{neural_net_forward.1} parent=1 // pred_check_branch
      %10 = sbr.rel (0) target = $region5
    $region4: #{neural_net_forward.1} parent=1 // pred_region
      _
    $region5: #{neural_net_forward.1} parent=1 // pred_fallthru
      _
    // Predicated region
    $region6: #{neural_net_forward.1} parent=1 // pred_check
      _
    $region7: #{neural_net_forward.1} parent=1 // pred_check_branch
      %12 = sbr.rel (0) target = $region9
    $region8: #{neural_net_forward.1} parent=1 // pred_region
      _
    $region9: #{neural_net_forward.1} parent=1 // pred_fallthru
      _
    // Predicated region
    $region10: #{neural_net_forward.1} parent=1 // pred_check
      _
    $region11: #{neural_net_forward.1} parent=1 // pred_check_branch
      %14 = sbr.rel (0) target = $region13
    $region12: #{neural_net_forward.1} parent=1 // pred_region
      _
    $region13: #{neural_net_forward.1} parent=1 // pred_fallthru
      _
    %v15 = vld [vmem:[%s0] sm:$0xff]
    %v16 = vld [vmem:[%s1] sm:$0xff]
    %v17 = vld [vmem:[%s1 + $0x8] sm:$0xff]
    %v18 = vld [vmem:[%s1 + $0x10] sm:$0xff]
    %v19 = vld [vmem:[%s1 + $0x18] sm:$0xff]
    %v20 = vld [vmem:[%s2] sm:$0x1]
    %v22 = vlaneseq
    %v23 = vshrl.u32 %v22, 7
    %v24 = vsub.s32 0, %v23
    %v25 = vrot.slane %v20, %v24
    %vm27 = vcmask 261120
    %v29 = vsel %vm27, %v15, 0
    %31 = vmatprep.subr.mxu0 0.0
    %32 = vmatpush1.msra.mxu0 0.0
    %33 = vmatprep.subr.mxu0 0.0
    %34 = vmatpush1.msra.mxu0 0.0
    %35 = vmatprep.subr.mxu0 0.0
    %36 = vmatpush1.msra.mxu0 0.0
    %37 = vmatprep.subr.mxu0 0.0
    %38 = vmatpush1.msra.mxu0 0.0
    %39 = vmatprep.subr.mxu0 0.0
    %40 = vmatpush1.msra.mxu0 0.0
    %41 = vmatprep.subr.mxu0 0.0
    %42 = vmatpush1.msra.mxu0 0.0
    %43 = vmatprep.subr.mxu0 0.0
    %44 = vmatpush1.msra.mxu0 0.0
    %45 = vmatprep.subr.mxu0 0.0
    %46 = vmatpush1.msra.mxu0 0.0
    %47 = vmatprep.subr.mxu0 0.0
    %48 = vmatpush1.msra.mxu0 0.0
    %49 = vmatprep.subr.mxu0 0.0
    %50 = vmatpush1.msra.mxu0 0.0
    %51 = vmatprep.subr.mxu0 0.0
    %52 = vmatpush1.msra.mxu0 0.0
    %53 = vmatprep.subr.mxu0 0.0
    %54 = vmatpush1.msra.mxu0 0.0
    %55 = vmatprep.subr.mxu0 0.0
    %56 = vmatpush1.msra.mxu0 %v19
    %57 = vmatprep.subr.mxu0 0.0
    %58 = vmatpush1.msra.mxu0 %v18
    %59 = vmatprep.subr.mxu0 0.0
    %60 = vmatpush1.msra.mxu0 %v17
    %61 = vmatprep.subr.mxu0 0.0
    %62 = vmatpush1.msra.mxu0 %v16
    %63 = vmatprep.subr.mxu0 0.0
    %64 = vmatpush2.msra.mxu0 0.0
    %65 = vmatprep.subr.mxu0 0.0
    %66 = vmatpush2.msra.mxu0 0.0
    %67 = vmatprep.subr.mxu0 0.0
    %68 = vmatpush2.msra.mxu0 0.0
    %69 = vmatprep.subr.mxu0 0.0
    %70 = vmatpush2.msra.mxu0 0.0
    %71 = vmatprep.subr.mxu0 0.0
    %72 = vmatpush2.msra.mxu0 0.0
    %73 = vmatprep.subr.mxu0 0.0
    %74 = vmatpush2.msra.mxu0 0.0
    %75 = vmatprep.subr.mxu0 0.0
    %76 = vmatpush2.msra.mxu0 0.0
    %77 = vmatprep.subr.mxu0 0.0
    %78 = vmatpush2.msra.mxu0 0.0
    %79 = vmatprep.subr.mxu0 0.0
    %80 = vmatpush2.msra.mxu0 0.0
    %81 = vmatprep.subr.mxu0 0.0
    %82 = vmatpush2.msra.mxu0 0.0
    %83 = vmatprep.subr.mxu0 0.0
    %84 = vmatpush2.msra.mxu0 0.0
    %85 = vmatprep.subr.mxu0 0.0
    %86 = vmatpush2.msra.mxu0 0.0
    %87 = vmatprep.subr.mxu0 0.0
    %88 = vmatpush2.msra.mxu0 0.0
    %89 = vmatprep.subr.mxu0 0.0
    %90 = vmatpush2.msra.mxu0 0.0
    %91 = vmatprep.subr.mxu0 0.0
    %92 = vmatpush2.msra.mxu0 0.0
    %93 = vmatprep.subr.mxu0 0.0
    %94 = vmatpush2.msra.mxu0 0.0
    %95 = vmatprep.mubr.f32.mxu0 0.0
    %96 = vmatmul.mubr.f32.gmra.mxu0 %v29
    %v97 = vpop.f32.mrf.mxu0
    %v98 = vadd.f32 %v25, %v97
    %v99 = vpop.f32.mrf.mxu0
    %100 = vdwg.mxu0
    %vm101 = vcmask 130048
    %102 = vst.msk [vmem:[#allocation2] sm:$0xff] %vm101, %v98
    // Predicated region
    $region14: #{neural_net_forward.1} parent=1 // pred_check
      _
    $region15: #{neural_net_forward.1} parent=1 // pred_check_branch
      %104 = sbr.rel (0) target = $region17
    $region16: #{neural_net_forward.1} parent=1 // pred_region
      %s106 = ssub.s32 128, 128
      %107 = vsyncadd [#allocation3], %s106
      %s109 = sshll.u32 [#allocation2], 4
      %s110 = int_to_ptr.vmem [resolvable:$true] %s109
      %112 = dma.vmem_to_hbm [thread:$0]  %s110, 128, %s3, [#allocation3]
    $region17: #{neural_net_forward.1} parent=1 // pred_fallthru
      _
    // Predicated region
    $region18: #{neural_net_forward.1} parent=1 // pred_check
      _
    $region19: #{neural_net_forward.1} parent=1 // pred_check_branch
      %114 = sbr.rel (0) target = $region21
    $region20: #{neural_net_forward.1} parent=1 // pred_region
      %115 = dma.done [#allocation3], 128
    $region21: #{neural_net_forward.1} parent=1 // pred_fallthru
      _
    %116 = vsyncpa [#allocation3], 1

</llo_original>
